<compile_context>
chip_gen: v7x
topology: tpu7x:2x2x1
jax: 0.10.0
libtpu: 0.0.40
codegen_flags: <defaults>
</compile_context>

<pallas_src>
import functools

import jax
import jax.numpy as jnp
import numpy as np
from jax import lax
from jax.experimental import pallas as pl
from jax.experimental.pallas import tpu as pltpu

EPS = 1e-5

# On v6e/v7x at real ResNet sizes, set this to jnp.bfloat16 (f32 accumulation is kept
# via preferred_element_type) for MXU throughput.  Kept f32 here so the tiny,
# memory-bound toy shapes stay bit-tight against the f32 reference.
MATMUL_DTYPE = jnp.float32


# ------------------------------ fused kernel ------------------------------- #

def _basic_block_kernel(x_ref, mask_ref, w1_ref, w2_ref,
                        g1_ref, b1_ref, g2_ref, b2_ref, o_ref, *, img_w):
    """Fused BasicBlock on (C, N*P) slabs (channels on sublanes, images*pixels on lanes)."""
    f32 = jnp.float32
    NP = x_ref.shape[1]
    masks = mask_ref[...]                                   # (9, NP), tiny

    def conv3x3(a, w_ref):
        # a: (Cin, NP) f32.  Build the (9*Cin, NP) tap-stacked operand with XLU rolls
        # + boundary masks (virtual zero padding), then ONE MXU matmul.
        rows = []
        for t in range(9):
            off = (t // 3 - 1) * img_w + (t % 3 - 1)        # dh*W + dw
            if off == 0:
                rows.append(a)                              # center tap: no shift, mask==1
            else:
                shifted = pltpu.roll(a, (-off) % NP, 1)     # shifted[c, p] = a[c, p+off]
                rows.append(shifted * masks[t:t + 1, :])
        xk = jnp.concatenate(rows, axis=0)                  # (9*Cin, NP)
        return jnp.dot(w_ref[...].astype(MATMUL_DTYPE), xk.astype(MATMUL_DTYPE),
                       preferred_element_type=f32)          # (Cout, NP)

    def bn_fold(y, g_ref, b_ref):
        # One-pass per-channel batch stats over lanes (N*H*W); fold the affine once.
        inv_cnt = 1.0 / float(NP)
        mean = jnp.sum(y, axis=1, keepdims=True) * inv_cnt                  # (C,1)
        var = jnp.maximum(jnp.sum(y * y, axis=1, keepdims=True) * inv_cnt
                          - mean * mean, 0.0)                               # biased var
        scale = lax.rsqrt(var + EPS) * g_ref[...]                           # (C,1)
        bias = b_ref[...] - mean * scale                                    # (C,1)
        return scale, bias

    x = x_ref[...].astype(f32)                              # residual stays in VMEM

    y1 = conv3x3(x, w1_ref)                                 # conv1
    s1, t1 = bn_fold(y1, g1_ref, b1_ref)                    # BN1 (batch stats)
    z1 = jnp.maximum(y1 * s1 + t1, 0.0)                     # ReLU

    y2 = conv3x3(z1, w2_ref)                                # conv2
    s2, t2 = bn_fold(y2, g2_ref, b2_ref)                    # BN2
    o_ref[...] = jnp.maximum(y2 * s2 + t2 + x, 0.0).astype(o_ref.dtype)  # +res, ReLU


# ------------------------------ wrapper ------------------------------------ #

def _make_tap_masks(n_imgs, H, W):
    """(9, N*H*W) f32 validity masks.  mask[t, n*P + h*W + w] = 1 iff tap t
    (dh=t//3-1, dw=t%3-1) reads an in-bounds pixel of the SAME image -> implements zero
    padding and blocks cross-image reads when images are concatenated along lanes."""
    P = H * W
    hh = np.arange(P) // W
    ww = np.arange(P) % W
    m = np.zeros((9, n_imgs * P), np.float32)
    for t in range(9):
        dh, dw = t // 3 - 1, t % 3 - 1
        valid = ((hh + dh >= 0) & (hh + dh < H) &
                 (ww + dw >= 0) & (ww + dw < W)).astype(np.float32)
        m[t] = np.tile(valid, n_imgs)
    return m


@jax.jit
def basic_block_forward(x_nchw, params):
    """Pallas BasicBlock.forward (stride=1, downsample=None, inplanes == planes)."""
    N, C, H, W = x_nchw.shape
    P = H * W
    Cout = params["w1m"].shape[0]
    assert C == Cout, "identity residual requires inplanes == planes"

    # (N,C,H,W) -> (C, N*P): channels on sublanes, images concatenated on lanes.
    x2d = jnp.transpose(x_nchw, (1, 0, 2, 3)).reshape(C, N * P)
    masks = jnp.asarray(_make_tap_masks(N, H, W))            # trace-time constant

    out2d = pl.pallas_call(
        functools.partial(_basic_block_kernel, img_w=W),
        out_shape=jax.ShapeDtypeStruct((Cout, N * P), jnp.float32),
        in_specs=[pl.BlockSpec(memory_space=pltpu.MemorySpace.VMEM)] * 8,
        out_specs=pl.BlockSpec(memory_space=pltpu.MemorySpace.VMEM),
    )(x2d, masks, params["w1m"], params["w2m"],
      params["g1"].reshape(Cout, 1), params["b1"].reshape(Cout, 1),
      params["g2"].reshape(Cout, 1), params["b2"].reshape(Cout, 1))

    return jnp.transpose(out2d.reshape(Cout, N, H, W), (1, 0, 2, 3))


# ------------------------------ parameter init ------------------------------ #

def init_params(key, inplanes, planes):
    k1, k2 = jax.random.split(key)
    fan1, fan2 = inplanes * 9, planes * 9
    # nn.Conv2d default init ~ U(-1/sqrt(fan_in), 1/sqrt(fan_in)), layout OIHW.
    w1_oihw = jax.random.uniform(k1, (planes, inplanes, 3, 3), jnp.float32,
                                 -1.0 / np.sqrt(fan1), 1.0 / np.sqrt(fan1))
    w2_oihw = jax.random.uniform(k2, (planes, planes, 3, 3), jnp.float32,
                                 -1.0 / np.sqrt(fan2), 1.0 / np.sqrt(fan2))

    def fold(w):   # (O,I,3,3) -> (O, 9*I); column index = (kh*3+kw)*I + ci
        O, I = w.shape[0], w.shape[1]
        return jnp.transpose(w, (0, 2, 3, 1)).reshape(O, 9 * I)

    return {
        "w1m": fold(w1_oihw), "w2m": fold(w2_oihw),
        "g1": jnp.ones((planes,), jnp.float32), "b1": jnp.zeros((planes,), jnp.float32),
        "g2": jnp.ones((planes,), jnp.float32), "b2": jnp.zeros((planes,), jnp.float32),
        "w1_oihw": w1_oihw, "w2_oihw": w2_oihw,     # only for the pure-JAX reference
    }


# ------------------------------ pure-JAX reference -------------------------- #

def ref_forward(x, p):
    def conv(x, w):
        return lax.conv_general_dilated(
            x, w, (1, 1), ((1, 1), (1, 1)),
            dimension_numbers=("NCHW", "OIHW", "NCHW"))

    def bn(x, g, b):
        m = jnp.mean(x, axis=(0, 2, 3), keepdims=True)
        v = jnp.mean((x - m) ** 2, axis=(0, 2, 3), keepdims=True)
        return (x - m) * lax.rsqrt(v + EPS) * g.reshape(1, -1, 1, 1) + b.reshape(1, -1, 1, 1)

    out = jax.nn.relu(bn(conv(x, p["w1_oihw"]), p["g1"], p["b1"]))
    out = bn(conv(out, p["w2_oihw"]), p["g2"], p["b2"]) + x
    return jax.nn.relu(out)


# ------------------------------ main ---------------------------------------- #

if __name__ == "__main__":
    inplanes = planes = 4            # identity residual requires inplanes == planes
    N, H, W = 2, 16, 16

    key = jax.random.PRNGKey(0)
    kx, kp = jax.random.split(key)
    x = jax.random.normal(kx, (N, inplanes, H, W), jnp.float32)   # NCHW like PyTorch
    params = init_params(kp, inplanes, planes)

    out = jax.block_until_ready(basic_block_forward(x, params))

    ref = jax.block_until_ready(ref_forward(x, params))
    np.testing.assert_allclose(np.asarray(out), np.asarray(ref), rtol=2e-3, atol=2e-3)

    print("KERNEL_OK")
</pallas_src>

<mosaic_0001>
module attributes {stable_mosaic.version = 11 : i64} {
  func.func @_basic_block_kernel(%arg0: memref<4x512xf32, #tpu.memory_space<vmem>>, %arg1: memref<9x512xf32, #tpu.memory_space<vmem>>, %arg2: memref<4x36xf32, #tpu.memory_space<vmem>>, %arg3: memref<4x36xf32, #tpu.memory_space<vmem>>, %arg4: memref<4x1xf32, #tpu.memory_space<vmem>>, %arg5: memref<4x1xf32, #tpu.memory_space<vmem>>, %arg6: memref<4x1xf32, #tpu.memory_space<vmem>>, %arg7: memref<4x1xf32, #tpu.memory_space<vmem>>, %arg8: memref<4x512xf32, #tpu.memory_space<vmem>>) attributes {dimension_semantics = [], scalar_prefetch = 0 : i64, scratch_operands = 0 : i64, tpu.core_type = #tpu.core_type<tc>} {
    %c0 = arith.constant 0 : index
    %c0_0 = arith.constant 0 : index
    %0 = vector.load %arg1[%c0, %c0_0] : memref<9x512xf32, #tpu.memory_space<vmem>>, vector<9x512xf32>
    %c0_1 = arith.constant 0 : index
    %c0_2 = arith.constant 0 : index
    %1 = vector.load %arg0[%c0_1, %c0_2] : memref<4x512xf32, #tpu.memory_space<vmem>>, vector<4x512xf32>
    %c17_i32 = arith.constant 17 : i32
    %2 = tpu.dynamic_rotate %1 by %c17_i32 dim 1 : vector<4x512xf32>, i32 -> vector<4x512xf32>
    %3 = vector.extract_strided_slice %0 {offsets = [0, 0], sizes = [1, 512], strides = [1, 1]} : vector<9x512xf32> to vector<1x512xf32>
    %4 = vector.broadcast %3 : vector<1x512xf32> to vector<4x512xf32>
    %5 = arith.mulf %2, %4 : vector<4x512xf32>
    %c16_i32 = arith.constant 16 : i32
    %6 = tpu.dynamic_rotate %1 by %c16_i32 dim 1 : vector<4x512xf32>, i32 -> vector<4x512xf32>
    %7 = vector.extract_strided_slice %0 {offsets = [1, 0], sizes = [1, 512], strides = [1, 1]} : vector<9x512xf32> to vector<1x512xf32>
    %8 = vector.broadcast %7 : vector<1x512xf32> to vector<4x512xf32>
    %9 = arith.mulf %6, %8 : vector<4x512xf32>
    %c15_i32 = arith.constant 15 : i32
    %10 = tpu.dynamic_rotate %1 by %c15_i32 dim 1 : vector<4x512xf32>, i32 -> vector<4x512xf32>
    %11 = vector.extract_strided_slice %0 {offsets = [2, 0], sizes = [1, 512], strides = [1, 1]} : vector<9x512xf32> to vector<1x512xf32>
    %12 = vector.broadcast %11 : vector<1x512xf32> to vector<4x512xf32>
    %13 = arith.mulf %10, %12 : vector<4x512xf32>
    %c1_i32 = arith.constant 1 : i32
    %14 = tpu.dynamic_rotate %1 by %c1_i32 dim 1 : vector<4x512xf32>, i32 -> vector<4x512xf32>
    %15 = vector.extract_strided_slice %0 {offsets = [3, 0], sizes = [1, 512], strides = [1, 1]} : vector<9x512xf32> to vector<1x512xf32>
    %16 = vector.broadcast %15 : vector<1x512xf32> to vector<4x512xf32>
    %17 = arith.mulf %14, %16 : vector<4x512xf32>
    %c511_i32 = arith.constant 511 : i32
    %18 = tpu.dynamic_rotate %1 by %c511_i32 dim 1 : vector<4x512xf32>, i32 -> vector<4x512xf32>
    %19 = vector.extract_strided_slice %0 {offsets = [5, 0], sizes = [1, 512], strides = [1, 1]} : vector<9x512xf32> to vector<1x512xf32>
    %20 = vector.broadcast %19 : vector<1x512xf32> to vector<4x512xf32>
    %21 = arith.mulf %18, %20 : vector<4x512xf32>
    %c497_i32 = arith.constant 497 : i32
    %22 = tpu.dynamic_rotate %1 by %c497_i32 dim 1 : vector<4x512xf32>, i32 -> vector<4x512xf32>
    %23 = vector.extract_strided_slice %0 {offsets = [6, 0], sizes = [1, 512], strides = [1, 1]} : vector<9x512xf32> to vector<1x512xf32>
    %24 = vector.broadcast %23 : vector<1x512xf32> to vector<4x512xf32>
    %25 = arith.mulf %22, %24 : vector<4x512xf32>
    %c496_i32 = arith.constant 496 : i32
    %26 = tpu.dynamic_rotate %1 by %c496_i32 dim 1 : vector<4x512xf32>, i32 -> vector<4x512xf32>
    %27 = vector.extract_strided_slice %0 {offsets = [7, 0], sizes = [1, 512], strides = [1, 1]} : vector<9x512xf32> to vector<1x512xf32>
    %28 = vector.broadcast %27 : vector<1x512xf32> to vector<4x512xf32>
    %29 = arith.mulf %26, %28 : vector<4x512xf32>
    %c495_i32 = arith.constant 495 : i32
    %30 = tpu.dynamic_rotate %1 by %c495_i32 dim 1 : vector<4x512xf32>, i32 -> vector<4x512xf32>
    %31 = vector.extract_strided_slice %0 {offsets = [8, 0], sizes = [1, 512], strides = [1, 1]} : vector<9x512xf32> to vector<1x512xf32>
    %32 = vector.broadcast %31 : vector<1x512xf32> to vector<4x512xf32>
    %33 = arith.mulf %30, %32 : vector<4x512xf32>
    %34 = tpu.concatenate %5, %9, %13, %17, %1, %21, %25, %29, %33 in 0 : vector<4x512xf32>, vector<4x512xf32>, vector<4x512xf32>, vector<4x512xf32>, vector<4x512xf32>, vector<4x512xf32>, vector<4x512xf32>, vector<4x512xf32>, vector<4x512xf32> -> vector<36x512xf32>
    %c0_3 = arith.constant 0 : index
    %c0_4 = arith.constant 0 : index
    %35 = vector.load %arg2[%c0_3, %c0_4] : memref<4x36xf32, #tpu.memory_space<vmem>>, vector<4x36xf32>
    %cst = arith.constant dense<0.000000e+00> : vector<4x512xf32>
    %36 = tpu.matmul %35, %34, %cst {dimension_numbers = #tpu.dot_dimension_numbers<[1], [0], [0], [1], [0, 0, 1, 1], [], []>} : vector<4x36xf32>, vector<36x512xf32>, vector<4x512xf32> -> vector<4x512xf32>
    %cst_5 = arith.constant dense<0.000000e+00> : vector<4xf32>
    %37 = vector.multi_reduction <add>, %36, %cst_5 [1] : vector<4x512xf32> to vector<4xf32>
    %38 = vector.shape_cast %37 : vector<4xf32> to vector<4x1xf32>
    %cst_6 = arith.constant 0.001953125 : f32
    %39 = vector.broadcast %cst_6 : f32 to vector<4x1xf32>
    %40 = arith.mulf %38, %39 : vector<4x1xf32>
    %41 = arith.mulf %36, %36 : vector<4x512xf32>
    %cst_7 = arith.constant dense<0.000000e+00> : vector<4xf32>
    %42 = vector.multi_reduction <add>, %41, %cst_7 [1] : vector<4x512xf32> to vector<4xf32>
    %43 = vector.shape_cast %42 : vector<4xf32> to vector<4x1xf32>
    %cst_8 = arith.constant 0.001953125 : f32
    %44 = vector.broadcast %cst_8 : f32 to vector<4x1xf32>
    %45 = arith.mulf %43, %44 : vector<4x1xf32>
    %46 = arith.mulf %40, %40 : vector<4x1xf32>
    %47 = arith.subf %45, %46 : vector<4x1xf32>
    %cst_9 = arith.constant 0.000000e+00 : f32
    %48 = vector.broadcast %cst_9 : f32 to vector<4x1xf32>
    %49 = arith.maximumf %47, %48 : vector<4x1xf32>
    %cst_10 = arith.constant 9.99999974E-6 : f32
    %50 = vector.broadcast %cst_10 : f32 to vector<4x1xf32>
    %51 = arith.addf %49, %50 : vector<4x1xf32>
    %52 = math.rsqrt %51 : vector<4x1xf32>
    %c0_11 = arith.constant 0 : index
    %c0_12 = arith.constant 0 : index
    %53 = vector.load %arg4[%c0_11, %c0_12] : memref<4x1xf32, #tpu.memory_space<vmem>>, vector<4x1xf32>
    %54 = arith.mulf %52, %53 : vector<4x1xf32>
    %c0_13 = arith.constant 0 : index
    %c0_14 = arith.constant 0 : index
    %55 = vector.load %arg5[%c0_13, %c0_14] : memref<4x1xf32, #tpu.memory_space<vmem>>, vector<4x1xf32>
    %56 = arith.mulf %40, %54 : vector<4x1xf32>
    %57 = arith.subf %55, %56 : vector<4x1xf32>
    %58 = vector.broadcast %54 : vector<4x1xf32> to vector<4x512xf32>
    %59 = arith.mulf %36, %58 : vector<4x512xf32>
    %60 = vector.broadcast %57 : vector<4x1xf32> to vector<4x512xf32>
    %61 = arith.addf %59, %60 : vector<4x512xf32>
    %cst_15 = arith.constant 0.000000e+00 : f32
    %62 = vector.broadcast %cst_15 : f32 to vector<4x512xf32>
    %63 = arith.maximumf %61, %62 : vector<4x512xf32>
    %c17_i32_16 = arith.constant 17 : i32
    %64 = tpu.dynamic_rotate %63 by %c17_i32_16 dim 1 : vector<4x512xf32>, i32 -> vector<4x512xf32>
    %65 = vector.extract_strided_slice %0 {offsets = [0, 0], sizes = [1, 512], strides = [1, 1]} : vector<9x512xf32> to vector<1x512xf32>
    %66 = vector.broadcast %65 : vector<1x512xf32> to vector<4x512xf32>
    %67 = arith.mulf %64, %66 : vector<4x512xf32>
    %c16_i32_17 = arith.constant 16 : i32
    %68 = tpu.dynamic_rotate %63 by %c16_i32_17 dim 1 : vector<4x512xf32>, i32 -> vector<4x512xf32>
    %69 = vector.extract_strided_slice %0 {offsets = [1, 0], sizes = [1, 512], strides = [1, 1]} : vector<9x512xf32> to vector<1x512xf32>
    %70 = vector.broadcast %69 : vector<1x512xf32> to vector<4x512xf32>
    %71 = arith.mulf %68, %70 : vector<4x512xf32>
    %c15_i32_18 = arith.constant 15 : i32
    %72 = tpu.dynamic_rotate %63 by %c15_i32_18 dim 1 : vector<4x512xf32>, i32 -> vector<4x512xf32>
    %73 = vector.extract_strided_slice %0 {offsets = [2, 0], sizes = [1, 512], strides = [1, 1]} : vector<9x512xf32> to vector<1x512xf32>
    %74 = vector.broadcast %73 : vector<1x512xf32> to vector<4x512xf32>
    %75 = arith.mulf %72, %74 : vector<4x512xf32>
    %c1_i32_19 = arith.constant 1 : i32
    %76 = tpu.dynamic_rotate %63 by %c1_i32_19 dim 1 : vector<4x512xf32>, i32 -> vector<4x512xf32>
    %77 = vector.extract_strided_slice %0 {offsets = [3, 0], sizes = [1, 512], strides = [1, 1]} : vector<9x512xf32> to vector<1x512xf32>
    %78 = vector.broadcast %77 : vector<1x512xf32> to vector<4x512xf32>
    %79 = arith.mulf %76, %78 : vector<4x512xf32>
    %c511_i32_20 = arith.constant 511 : i32
    %80 = tpu.dynamic_rotate %63 by %c511_i32_20 dim 1 : vector<4x512xf32>, i32 -> vector<4x512xf32>
    %81 = vector.extract_strided_slice %0 {offsets = [5, 0], sizes = [1, 512], strides = [1, 1]} : vector<9x512xf32> to vector<1x512xf32>
    %82 = vector.broadcast %81 : vector<1x512xf32> to vector<4x512xf32>
    %83 = arith.mulf %80, %82 : vector<4x512xf32>
    %c497_i32_21 = arith.constant 497 : i32
    %84 = tpu.dynamic_rotate %63 by %c497_i32_21 dim 1 : vector<4x512xf32>, i32 -> vector<4x512xf32>
    %85 = vector.extract_strided_slice %0 {offsets = [6, 0], sizes = [1, 512], strides = [1, 1]} : vector<9x512xf32> to vector<1x512xf32>
    %86 = vector.broadcast %85 : vector<1x512xf32> to vector<4x512xf32>
    %87 = arith.mulf %84, %86 : vector<4x512xf32>
    %c496_i32_22 = arith.constant 496 : i32
    %88 = tpu.dynamic_rotate %63 by %c496_i32_22 dim 1 : vector<4x512xf32>, i32 -> vector<4x512xf32>
    %89 = vector.extract_strided_slice %0 {offsets = [7, 0], sizes = [1, 512], strides = [1, 1]} : vector<9x512xf32> to vector<1x512xf32>
    %90 = vector.broadcast %89 : vector<1x512xf32> to vector<4x512xf32>
    %91 = arith.mulf %88, %90 : vector<4x512xf32>
    %c495_i32_23 = arith.constant 495 : i32
    %92 = tpu.dynamic_rotate %63 by %c495_i32_23 dim 1 : vector<4x512xf32>, i32 -> vector<4x512xf32>
    %93 = vector.extract_strided_slice %0 {offsets = [8, 0], sizes = [1, 512], strides = [1, 1]} : vector<9x512xf32> to vector<1x512xf32>
    %94 = vector.broadcast %93 : vector<1x512xf32> to vector<4x512xf32>
    %95 = arith.mulf %92, %94 : vector<4x512xf32>
    %96 = tpu.concatenate %67, %71, %75, %79, %63, %83, %87, %91, %95 in 0 : vector<4x512xf32>, vector<4x512xf32>, vector<4x512xf32>, vector<4x512xf32>, vector<4x512xf32>, vector<4x512xf32>, vector<4x512xf32>, vector<4x512xf32>, vector<4x512xf32> -> vector<36x512xf32>
    %c0_24 = arith.constant 0 : index
    %c0_25 = arith.constant 0 : index
    %97 = vector.load %arg3[%c0_24, %c0_25] : memref<4x36xf32, #tpu.memory_space<vmem>>, vector<4x36xf32>
    %cst_26 = arith.constant dense<0.000000e+00> : vector<4x512xf32>
    %98 = tpu.matmul %97, %96, %cst_26 {dimension_numbers = #tpu.dot_dimension_numbers<[1], [0], [0], [1], [0, 0, 1, 1], [], []>} : vector<4x36xf32>, vector<36x512xf32>, vector<4x512xf32> -> vector<4x512xf32>
    %cst_27 = arith.constant dense<0.000000e+00> : vector<4xf32>
    %99 = vector.multi_reduction <add>, %98, %cst_27 [1] : vector<4x512xf32> to vector<4xf32>
    %100 = vector.shape_cast %99 : vector<4xf32> to vector<4x1xf32>
    %cst_28 = arith.constant 0.001953125 : f32
    %101 = vector.broadcast %cst_28 : f32 to vector<4x1xf32>
    %102 = arith.mulf %100, %101 : vector<4x1xf32>
    %103 = arith.mulf %98, %98 : vector<4x512xf32>
    %cst_29 = arith.constant dense<0.000000e+00> : vector<4xf32>
    %104 = vector.multi_reduction <add>, %103, %cst_29 [1] : vector<4x512xf32> to vector<4xf32>
    %105 = vector.shape_cast %104 : vector<4xf32> to vector<4x1xf32>
    %cst_30 = arith.constant 0.001953125 : f32
    %106 = vector.broadcast %cst_30 : f32 to vector<4x1xf32>
    %107 = arith.mulf %105, %106 : vector<4x1xf32>
    %108 = arith.mulf %102, %102 : vector<4x1xf32>
    %109 = arith.subf %107, %108 : vector<4x1xf32>
    %cst_31 = arith.constant 0.000000e+00 : f32
    %110 = vector.broadcast %cst_31 : f32 to vector<4x1xf32>
    %111 = arith.maximumf %109, %110 : vector<4x1xf32>
    %cst_32 = arith.constant 9.99999974E-6 : f32
    %112 = vector.broadcast %cst_32 : f32 to vector<4x1xf32>
    %113 = arith.addf %111, %112 : vector<4x1xf32>
    %114 = math.rsqrt %113 : vector<4x1xf32>
    %c0_33 = arith.constant 0 : index
    %c0_34 = arith.constant 0 : index
    %115 = vector.load %arg6[%c0_33, %c0_34] : memref<4x1xf32, #tpu.memory_space<vmem>>, vector<4x1xf32>
    %116 = arith.mulf %114, %115 : vector<4x1xf32>
    %c0_35 = arith.constant 0 : index
    %c0_36 = arith.constant 0 : index
    %117 = vector.load %arg7[%c0_35, %c0_36] : memref<4x1xf32, #tpu.memory_space<vmem>>, vector<4x1xf32>
    %118 = arith.mulf %102, %116 : vector<4x1xf32>
    %119 = arith.subf %117, %118 : vector<4x1xf32>
    %120 = vector.broadcast %116 : vector<4x1xf32> to vector<4x512xf32>
    %121 = arith.mulf %98, %120 : vector<4x512xf32>
    %122 = vector.broadcast %119 : vector<4x1xf32> to vector<4x512xf32>
    %123 = arith.addf %121, %122 : vector<4x512xf32>
    %124 = arith.addf %123, %1 : vector<4x512xf32>
    %cst_37 = arith.constant 0.000000e+00 : f32
    %125 = vector.broadcast %cst_37 : f32 to vector<4x512xf32>
    %126 = arith.maximumf %124, %125 : vector<4x512xf32>
    %c0_38 = arith.constant 0 : index
    %c0_39 = arith.constant 0 : index
    %127 = vector.load %arg8[%c0_38, %c0_39] : memref<4x512xf32, #tpu.memory_space<vmem>>, vector<4x512xf32>
    tpu.vector_store %arg8[%c0_38, %c0_39], %126 {strides = array<i32>} : memref<4x512xf32, #tpu.memory_space<vmem>>, vector<4x512xf32>,
    return
  }
}

</mosaic_0001>

<llo_original>
// kernel: basic_block_forward.1
$region0: #{basic_block_forward.1}
  #allocation0 [shape = 'u32[]', space=smem, size = 0x4, offset = 0x4, fixed_abs, tag = 'smem constant byte address 0x4 - core index']
  #allocation1 [shape = 'u32[144,128]{1,0:T(1,128)}', space=vmem, size = 0x12000, scoped, tag = 'internal scratch']
  %s0 = inlined_call_operand.vmem [shape: f32[4,512], index: 0, kind: input, shape index: {}]
  %s1 = inlined_call_operand.vmem [shape: f32[9,512], index: 1, kind: input, shape index: {}]
  %s2 = inlined_call_operand.vmem [shape: f32[4,36], index: 2, kind: input, shape index: {}]
  %s3 = inlined_call_operand.vmem [shape: f32[4,36], index: 3, kind: input, shape index: {}]
  %s4 = inlined_call_operand.vmem [shape: f32[4,1], index: 4, kind: input, shape index: {}]
  %s5 = inlined_call_operand.vmem [shape: f32[4,1], index: 5, kind: input, shape index: {}]
  %s6 = inlined_call_operand.vmem [shape: f32[4,1], index: 6, kind: input, shape index: {}]
  %s7 = inlined_call_operand.vmem [shape: f32[4,1], index: 7, kind: input, shape index: {}]
  %s8 = inlined_call_operand.vmem [shape: f32[4,512], index: 8, kind: output, shape index: {}]
  %s9 = sld [smem:[#allocation0]]
  $region42: #{basic_block_forward.1} parent=0
    _
  %s11 = ssub.s32 1, %s9
  %s12 = scalar_select 0, %s11, %s9
  // Predicated region
  $region2: #{basic_block_forward.1} parent=0 // pred_check
    _
  $region3: #{basic_block_forward.1} parent=0 // pred_check_branch
    %14 = sbr.rel (0) target = $region5
  $region4: #{basic_block_forward.1} parent=0 // pred_region
    _
  $region5: #{basic_block_forward.1} parent=0 // pred_fallthru
    _
  // Predicated region
  $region6: #{basic_block_forward.1} parent=0 // pred_check
    _
  $region7: #{basic_block_forward.1} parent=0 // pred_check_branch
    %16 = sbr.rel (0) target = $region9
  $region8: #{basic_block_forward.1} parent=0 // pred_region
    _
  $region9: #{basic_block_forward.1} parent=0 // pred_fallthru
    _
  // Predicated region
  $region10: #{basic_block_forward.1} parent=0 // pred_check
    _
  $region11: #{basic_block_forward.1} parent=0 // pred_check_branch
    %18 = sbr.rel (0) target = $region13
  $region12: #{basic_block_forward.1} parent=0 // pred_region
    _
  $region13: #{basic_block_forward.1} parent=0 // pred_fallthru
    _
  // Predicated region
  $region14: #{basic_block_forward.1} parent=0 // pred_check
    _
  $region15: #{basic_block_forward.1} parent=0 // pred_check_branch
    %20 = sbr.rel (0) target = $region17
  $region16: #{basic_block_forward.1} parent=0 // pred_region
    _
  $region17: #{basic_block_forward.1} parent=0 // pred_fallthru
    _
  // Predicated region
  $region18: #{basic_block_forward.1} parent=0 // pred_check
    _
  $region19: #{basic_block_forward.1} parent=0 // pred_check_branch
    %22 = sbr.rel (0) target = $region21
  $region20: #{basic_block_forward.1} parent=0 // pred_region
    _
  $region21: #{basic_block_forward.1} parent=0 // pred_fallthru
    _
  // Predicated region
  $region22: #{basic_block_forward.1} parent=0 // pred_check
    _
  $region23: #{basic_block_forward.1} parent=0 // pred_check_branch
    %24 = sbr.rel (0) target = $region25
  $region24: #{basic_block_forward.1} parent=0 // pred_region
    _
  $region25: #{basic_block_forward.1} parent=0 // pred_fallthru
    _
  // Predicated region
  $region26: #{basic_block_forward.1} parent=0 // pred_check
    _
  $region27: #{basic_block_forward.1} parent=0 // pred_check_branch
    %26 = sbr.rel (0) target = $region29
  $region28: #{basic_block_forward.1} parent=0 // pred_region
    _
  $region29: #{basic_block_forward.1} parent=0 // pred_fallthru
    _
  // Predicated region
  $region30: #{basic_block_forward.1} parent=0 // pred_check
    _
  $region31: #{basic_block_forward.1} parent=0 // pred_check_branch
    %28 = sbr.rel (0) target = $region33
  $region32: #{basic_block_forward.1} parent=0 // pred_region
    _
  $region33: #{basic_block_forward.1} parent=0 // pred_fallthru
    _
  %v29 = vld [vmem:[%s1] sm:$0xff]
  %v30 = vld [vmem:[%s1 + $0x8] sm:$0xff]
  %v31 = vld [vmem:[%s1 + $0x10] sm:$0xff]
  %v32 = vld [vmem:[%s1 + $0x18] sm:$0xff]
  %v33 = vld [vmem:[%s1 + $0x20] sm:$0x1]
  %v34 = vld [vmem:[%s1 + $0x28] sm:$0x1]
  %v35 = vld [vmem:[%s1 + $0x30] sm:$0x1]
  %v36 = vld [vmem:[%s1 + $0x38] sm:$0x1]
  %v37 = vld [vmem:[%s0] sm:$0xff]
  %v38 = vld [vmem:[%s0 + $0x8] sm:$0xff]
  %v41 = vcombine.high %v37, %v37
  %v42 = vcombine.high %v38, %v38
  %45 = vrot.lane.b32.xlu0 %v37, 17
  %v46 = vpop.permute.xlu0 %45
  %47 = vrot.lane.b32.xlu0 %v41, 17
  %v48 = vpop.permute.xlu0 %47
  %49 = vrot.lane.b32.xlu0 %v38, 17
  %v50 = vpop.permute.xlu0 %49
  %51 = vrot.lane.b32.xlu0 %v42, 17
  %v52 = vpop.permute.xlu0 %51
  %v53 = vlaneseq
  %v54 = vand.u32 %v53, 127
  %vm55 = vcmp.lt.s32.totalorder %v54, 17
  %v56 = vsel %vm55, %v50, %v52
  %v57 = vsel %vm55, %v48, %v50
  %v58 = vsel %vm55, %v46, %v48
  %v59 = vsel %vm55, %v52, %v46
  %v60 = vlaneseq
  %v61 = vshrl.u32 %v60, 7
  %v62 = vsub.s32 0, %v61
  %v63 = vrot.slane %v29, %v62
  %v64 = vlaneseq
  %v65 = vshrl.u32 %v64, 7
  %v66 = vsub.s32 0, %v65
  %v67 = vrot.slane %v30, %v66
  %v68 = vlaneseq
  %v69 = vshrl.u32 %v68, 7
  %v70 = vsub.s32 0, %v69
  %v71 = vrot.slane %v31, %v70
  %v72 = vlaneseq
  %v73 = vshrl.u32 %v72, 7
  %v74 = vsub.s32 0, %v73
  %v75 = vrot.slane %v32, %v74
  %v76 = vmul.f32 %v59, %v63
  %v77 = vmul.f32 %v58, %v67
  %v78 = vmul.f32 %v57, %v71
  %v79 = vmul.f32 %v56, %v75
  %80 = vrot.lane.b32.xlu0 %v37, 16
  %v81 = vpop.permute.xlu0 %80
  %82 = vrot.lane.b32.xlu0 %v41, 16
  %v83 = vpop.permute.xlu0 %82
  %84 = vrot.lane.b32.xlu0 %v38, 16
  %v85 = vpop.permute.xlu0 %84
  %86 = vrot.lane.b32.xlu0 %v42, 16
  %v87 = vpop.permute.xlu0 %86
  %vm88 = vcmp.lt.s32.totalorder %v54, 16
  %v89 = vsel %vm88, %v85, %v87
  %v90 = vsel %vm88, %v83, %v85
  %v91 = vsel %vm88, %v81, %v83
  %v92 = vsel %vm88, %v87, %v81
  %v93 = vlaneseq
  %v94 = vshrl.u32 %v93, 7
  %v95 = vsub.s32 1, %v94
  %v96 = vrot.slane %v29, %v95
  %v97 = vlaneseq
  %v98 = vshrl.u32 %v97, 7
  %v99 = vsub.s32 1, %v98
  %v100 = vrot.slane %v30, %v99
  %v101 = vlaneseq
  %v102 = vshrl.u32 %v101, 7
  %v103 = vsub.s32 1, %v102
  %v104 = vrot.slane %v31, %v103
  %v105 = vlaneseq
  %v106 = vshrl.u32 %v105, 7
  %v107 = vsub.s32 1, %v106
  %v108 = vrot.slane %v32, %v107
  %v109 = vmul.f32 %v92, %v96
  %v110 = vmul.f32 %v91, %v100
  %v111 = vmul.f32 %v90, %v104
  %v112 = vmul.f32 %v89, %v108
  %113 = vrot.lane.b32.xlu0 %v37, 15
  %v114 = vpop.permute.xlu0 %113
  %115 = vrot.lane.b32.xlu0 %v41, 15
  %v116 = vpop.permute.xlu0 %115
  %117 = vrot.lane.b32.xlu0 %v38, 15
  %v118 = vpop.permute.xlu0 %117
  %119 = vrot.lane.b32.xlu0 %v42, 15
  %v120 = vpop.permute.xlu0 %119
  %vm121 = vcmp.lt.s32.totalorder %v54, 15
  %v122 = vsel %vm121, %v118, %v120
  %v123 = vsel %vm121, %v116, %v118
  %v124 = vsel %vm121, %v114, %v116
  %v125 = vsel %vm121, %v120, %v114
  %v126 = vlaneseq
  %v127 = vshrl.u32 %v126, 7
  %v128 = vsub.s32 2, %v127
  %v129 = vrot.slane %v29, %v128
  %v130 = vlaneseq
  %v131 = vshrl.u32 %v130, 7
  %v132 = vsub.s32 2, %v131
  %v133 = vrot.slane %v30, %v132
  %v134 = vlaneseq
  %v135 = vshrl.u32 %v134, 7
  %v136 = vsub.s32 2, %v135
  %v137 = vrot.slane %v31, %v136
  %v138 = vlaneseq
  %v139 = vshrl.u32 %v138, 7
  %v140 = vsub.s32 2, %v139
  %v141 = vrot.slane %v32, %v140
  %v142 = vmul.f32 %v125, %v129
  %v143 = vmul.f32 %v124, %v133
  %v144 = vmul.f32 %v123, %v137
  %v145 = vmul.f32 %v122, %v141
  %146 = vrot.lane.b32.xlu0 %v37, 1
  %v147 = vpop.permute.xlu0 %146
  %148 = vrot.lane.b32.xlu0 %v41, 1
  %v149 = vpop.permute.xlu0 %148
  %150 = vrot.lane.b32.xlu0 %v38, 1
  %v151 = vpop.permute.xlu0 %150
  %152 = vrot.lane.b32.xlu0 %v42, 1
  %v153 = vpop.permute.xlu0 %152
  %vm154 = vcmp.lt.s32.totalorder %v54, 1
  %v155 = vsel %vm154, %v151, %v153
  %v156 = vsel %vm154, %v149, %v151
  %v157 = vsel %vm154, %v147, %v149
  %v158 = vsel %vm154, %v153, %v147
  %v159 = vlaneseq
  %v160 = vshrl.u32 %v159, 7
  %v161 = vsub.s32 3, %v160
  %v162 = vrot.slane %v29, %v161
  %v163 = vlaneseq
  %v164 = vshrl.u32 %v163, 7
  %v165 = vsub.s32 3, %v164
  %v166 = vrot.slane %v30, %v165
  %v167 = vlaneseq
  %v168 = vshrl.u32 %v167, 7
  %v169 = vsub.s32 3, %v168
  %v170 = vrot.slane %v31, %v169
  %v171 = vlaneseq
  %v172 = vshrl.u32 %v171, 7
  %v173 = vsub.s32 3, %v172
  %v174 = vrot.slane %v32, %v173
  %v175 = vmul.f32 %v158, %v162
  %v176 = vmul.f32 %v157, %v166
  %v177 = vmul.f32 %v156, %v170
  %v178 = vmul.f32 %v155, %v174
  %179 = vrot.lane.b32.xlu0 %v37, 127
  %v180 = vpop.permute.xlu0 %179
  %181 = vrot.lane.b32.xlu0 %v41, 127
  %v182 = vpop.permute.xlu0 %181
  %183 = vrot.lane.b32.xlu0 %v38, 127
  %v184 = vpop.permute.xlu0 %183
  %185 = vrot.lane.b32.xlu0 %v42, 127
  %v186 = vpop.permute.xlu0 %185
  %vm187 = vcmp.lt.s32.totalorder %v54, 127
  %v188 = vsel %vm187, %v184, %v186
  %v189 = vsel %vm187, %v182, %v184
  %v190 = vsel %vm187, %v180, %v182
  %v191 = vsel %vm187, %v186, %v180
  %v192 = vlaneseq
  %v193 = vshrl.u32 %v192, 7
  %v194 = vsub.s32 5, %v193
  %v195 = vrot.slane %v29, %v194
  %v196 = vlaneseq
  %v197 = vshrl.u32 %v196, 7
  %v198 = vsub.s32 5, %v197
  %v199 = vrot.slane %v30, %v198
  %v200 = vlaneseq
  %v201 = vshrl.u32 %v200, 7
  %v202 = vsub.s32 5, %v201
  %v203 = vrot.slane %v31, %v202
  %v204 = vlaneseq
  %v205 = vshrl.u32 %v204, 7
  %v206 = vsub.s32 5, %v205
  %v207 = vrot.slane %v32, %v206
  %v208 = vmul.f32 %v190, %v195
  %v209 = vmul.f32 %v189, %v199
  %v210 = vmul.f32 %v188, %v203
  %v211 = vmul.f32 %v191, %v207
  %212 = vrot.lane.b32.xlu0 %v37, 113
  %v213 = vpop.permute.xlu0 %212
  %214 = vrot.lane.b32.xlu0 %v41, 113
  %v215 = vpop.permute.xlu0 %214
  %216 = vrot.lane.b32.xlu0 %v38, 113
  %v217 = vpop.permute.xlu0 %216
  %218 = vrot.lane.b32.xlu0 %v42, 113
  %v219 = vpop.permute.xlu0 %218
  %vm220 = vcmp.lt.s32.totalorder %v54, 113
  %v221 = vsel %vm220, %v217, %v219
  %v222 = vsel %vm220, %v215, %v217
  %v223 = vsel %vm220, %v213, %v215
  %v224 = vsel %vm220, %v219, %v213
  %v225 = vlaneseq
  %v226 = vshrl.u32 %v225, 7
  %v227 = vsub.s32 6, %v226
  %v228 = vrot.slane %v29, %v227
  %v229 = vlaneseq
  %v230 = vshrl.u32 %v229, 7
  %v231 = vsub.s32 6, %v230
  %v232 = vrot.slane %v30, %v231
  %v233 = vlaneseq
  %v234 = vshrl.u32 %v233, 7
  %v235 = vsub.s32 6, %v234
  %v236 = vrot.slane %v31, %v235
  %v237 = vlaneseq
  %v238 = vshrl.u32 %v237, 7
  %v239 = vsub.s32 6, %v238
  %v240 = vrot.slane %v32, %v239
  %v241 = vmul.f32 %v223, %v228
  %v242 = vmul.f32 %v222, %v232
  %v243 = vmul.f32 %v221, %v236
  %v244 = vmul.f32 %v224, %v240
  %245 = vrot.lane.b32.xlu0 %v37, 112
  %v246 = vpop.permute.xlu0 %245
  %247 = vrot.lane.b32.xlu0 %v41, 112
  %v248 = vpop.permute.xlu0 %247
  %249 = vrot.lane.b32.xlu0 %v38, 112
  %v250 = vpop.permute.xlu0 %249
  %251 = vrot.lane.b32.xlu0 %v42, 112
  %v252 = vpop.permute.xlu0 %251
  %vm253 = vcmp.lt.s32.totalorder %v54, 112
  %v254 = vsel %vm253, %v250, %v252
  %v255 = vsel %vm253, %v248, %v250
  %v256 = vsel %vm253, %v246, %v248
  %v257 = vsel %vm253, %v252, %v246
  %v258 = vlaneseq
  %v259 = vshrl.u32 %v258, 7
  %v260 = vsub.s32 7, %v259
  %v261 = vrot.slane %v29, %v260
  %v262 = vlaneseq
  %v263 = vshrl.u32 %v262, 7
  %v264 = vsub.s32 7, %v263
  %v265 = vrot.slane %v30, %v264
  %v266 = vlaneseq
  %v267 = vshrl.u32 %v266, 7
  %v268 = vsub.s32 7, %v267
  %v269 = vrot.slane %v31, %v268
  %v270 = vlaneseq
  %v271 = vshrl.u32 %v270, 7
  %v272 = vsub.s32 7, %v271
  %v273 = vrot.slane %v32, %v272
  %v274 = vmul.f32 %v256, %v261
  %v275 = vmul.f32 %v255, %v265
  %v276 = vmul.f32 %v254, %v269
  %v277 = vmul.f32 %v257, %v273
  %278 = vrot.lane.b32.xlu0 %v37, 111
  %v279 = vpop.permute.xlu0 %278
  %280 = vrot.lane.b32.xlu0 %v41, 111
  %v281 = vpop.permute.xlu0 %280
  %282 = vrot.lane.b32.xlu0 %v38, 111
  %v283 = vpop.permute.xlu0 %282
  %284 = vrot.lane.b32.xlu0 %v42, 111
  %v285 = vpop.permute.xlu0 %284
  %vm286 = vcmp.lt.s32.totalorder %v54, 111
  %v287 = vsel %vm286, %v283, %v285
  %v288 = vsel %vm286, %v281, %v283
  %v289 = vsel %vm286, %v279, %v281
  %v290 = vsel %vm286, %v285, %v279
  %v291 = vlaneseq
  %v292 = vshrl.u32 %v291, 7
  %v293 = vsub.s32 0, %v292
  %v294 = vrot.slane %v33, %v293
  %v295 = vlaneseq
  %v296 = vshrl.u32 %v295, 7
  %v297 = vsub.s32 0, %v296
  %v298 = vrot.slane %v34, %v297
  %v299 = vlaneseq
  %v300 = vshrl.u32 %v299, 7
  %v301 = vsub.s32 0, %v300
  %v302 = vrot.slane %v35, %v301
  %v303 = vlaneseq
  %v304 = vshrl.u32 %v303, 7
  %v305 = vsub.s32 0, %v304
  %v306 = vrot.slane %v36, %v305
  %v307 = vmul.f32 %v289, %v294
  %v308 = vmul.f32 %v288, %v298
  %v309 = vmul.f32 %v287, %v302
  %v310 = vmul.f32 %v290, %v306
  %v315 = vrot.slane %v109, 4
  %v316 = vrot.slane %v110, 4
  %v317 = vrot.slane %v111, 4
  %v318 = vrot.slane %v112, 4
  %v327 = vrot.slane %v175, 4
  %v328 = vrot.slane %v176, 4
  %v329 = vrot.slane %v177, 4
  %v330 = vrot.slane %v178, 4
  %v339 = vrot.slane %v208, 4
  %v340 = vrot.slane %v209, 4
  %v341 = vrot.slane %v210, 4
  %v342 = vrot.slane %v211, 4
  %v351 = vrot.slane %v274, 4
  %v352 = vrot.slane %v275, 4
  %v353 = vrot.slane %v276, 4
  %v354 = vrot.slane %v277, 4
  %vm359 = vcmask 1043456
  %v360 = vsel %vm359, %v76, %v315
  %v361 = vsel %vm359, %v77, %v316
  %v362 = vsel %vm359, %v78, %v317
  %v363 = vsel %vm359, %v79, %v318
  %v364 = vsel %vm359, %v142, %v327
  %v365 = vsel %vm359, %v143, %v328
  %v366 = vsel %vm359, %v144, %v329
  %v367 = vsel %vm359, %v145, %v330
  %v368 = vsel %vm359, %v37, %v339
  %v369 = vsel %vm359, %v41, %v340
  %v370 = vsel %vm359, %v38, %v341
  %v371 = vsel %vm359, %v42, %v342
  %v372 = vsel %vm359, %v241, %v351
  %v373 = vsel %vm359, %v242, %v352
  %v374 = vsel %vm359, %v243, %v353
  %v375 = vsel %vm359, %v244, %v354
  %v376 = vld [vmem:[%s2] sm:$0xf]
  %vm377 = vcmask 293888
  %v379 = vsel %vm377, %v376, 0
  %v382 = vsel %vm359, %v307, 0
  %v385 = vsel %vm359, %v308, 0
  %v388 = vsel %vm359, %v309, 0
  %v391 = vsel %vm359, %v310, 0
  %393 = vmatprep.subr.mxu0 %v361
  %394 = vmatpush1.msra.mxu0 %v360
  %395 = vmatprep.subr.mxu0 %v365
  %396 = vmatpush1.msra.mxu0 %v364
  %397 = vmatprep.subr.mxu0 %v369
  %398 = vmatpush1.msra.mxu0 %v368
  %399 = vmatprep.subr.mxu0 %v373
  %400 = vmatpush1.msra.mxu0 %v372
  %401 = vmatprep.subr.mxu0 %v385
  %402 = vmatpush1.msra.mxu0 %v382
  %403 = vmatprep.subr.mxu0 0.0
  %404 = vmatpush1.msra.mxu0 0.0
  %405 = vmatprep.subr.mxu0 0.0
  %406 = vmatpush1.msra.mxu0 0.0
  %407 = vmatprep.subr.mxu0 0.0
  %408 = vmatpush1.msra.mxu0 0.0
  %409 = vmatprep.subr.mxu0 0.0
  %410 = vmatpush1.msra.mxu0 0.0
  %411 = vmatprep.subr.mxu0 0.0
  %412 = vmatpush1.msra.mxu0 0.0
  %413 = vmatprep.subr.mxu0 0.0
  %414 = vmatpush1.msra.mxu0 0.0
  %415 = vmatprep.subr.mxu0 0.0
  %416 = vmatpush1.msra.mxu0 0.0
  %417 = vmatprep.subr.mxu0 0.0
  %418 = vmatpush1.msra.mxu0 0.0
  %419 = vmatprep.subr.mxu0 0.0
  %420 = vmatpush1.msra.mxu0 0.0
  %421 = vmatprep.subr.mxu0 0.0
  %422 = vmatpush1.msra.mxu0 0.0
  %423 = vmatprep.subr.mxu0 0.0
  %424 = vmatpush1.msra.mxu0 0.0
  %425 = vmatprep.subr.mxu0 0.0
  %426 = vmatpush1.msra.mxu0 0.0
  %427 = vmatprep.subr.mxu0 0.0
  %428 = vmatpush1.msra.mxu0 0.0
  %429 = vmatprep.subr.mxu0 0.0
  %430 = vmatpush1.msra.mxu0 0.0
  %431 = vmatprep.subr.mxu0 0.0
  %432 = vmatpush1.msra.mxu0 0.0
  %433 = vmatprep.subr.mxu0 0.0
  %434 = vmatpush1.msra.mxu0 0.0
  %435 = vmatprep.subr.mxu0 0.0
  %436 = vmatpush1.msra.mxu0 0.0
  %437 = vmatprep.subr.mxu0 0.0
  %438 = vmatpush1.msra.mxu0 0.0
  %439 = vmatprep.subr.mxu0 0.0
  %440 = vmatpush1.msra.mxu0 0.0
  %441 = vmatprep.subr.mxu0 0.0
  %442 = vmatpush1.msra.mxu0 0.0
  %443 = vmatprep.subr.mxu0 0.0
  %444 = vmatpush1.msra.mxu0 0.0
  %445 = vmatprep.subr.mxu0 0.0
  %446 = vmatpush1.msra.mxu0 0.0
  %447 = vmatprep.subr.mxu0 0.0
  %448 = vmatpush1.msra.mxu0 0.0
  %449 = vmatprep.subr.mxu0 0.0
  %450 = vmatpush1.msra.mxu0 0.0
  %451 = vmatprep.subr.mxu0 0.0
  %452 = vmatpush1.msra.mxu0 0.0
  %453 = vmatprep.subr.mxu0 0.0
  %454 = vmatpush1.msra.mxu0 0.0
  %455 = vmatprep.subr.mxu0 0.0
  %456 = vmatpush1.msra.mxu0 0.0
  %457 = vmatprep.mubr.f32.mxu0 0.0
  %458 = vmatmul.mubr.f32.gmra.mrb[0].mxu0 %v379
  %v459 = vpop.f32.mrb[0].mxu0
  %v460 = vadd.f32 0.0, %v459
  %v461 = vpop.f32.mrb[0].mxu0
  %v462 = vadd.f32 0.0, %v461
  %463 = vdwg.mxu0
  %464 = vmatprep.subr.mxu0 %v363
  %465 = vmatpush1.msra.mxu0 %v362
  %466 = vmatprep.subr.mxu0 %v367
  %467 = vmatpush1.msra.mxu0 %v366
  %468 = vmatprep.subr.mxu0 %v371
  %469 = vmatpush1.msra.mxu0 %v370
  %470 = vmatprep.subr.mxu0 %v375
  %471 = vmatpush1.msra.mxu0 %v374
  %472 = vmatprep.subr.mxu0 %v391
  %473 = vmatpush1.msra.mxu0 %v388
  %474 = vmatprep.subr.mxu0 0.0
  %475 = vmatpush1.msra.mxu0 0.0
  %476 = vmatprep.subr.mxu0 0.0
  %477 = vmatpush1.msra.mxu0 0.0
  %478 = vmatprep.subr.mxu0 0.0
  %479 = vmatpush1.msra.mxu0 0.0
  %480 = vmatprep.subr.mxu0 0.0
  %481 = vmatpush1.msra.mxu0 0.0
  %482 = vmatprep.subr.mxu0 0.0
  %483 = vmatpush1.msra.mxu0 0.0
  %484 = vmatprep.subr.mxu0 0.0
  %485 = vmatpush1.msra.mxu0 0.0
  %486 = vmatprep.subr.mxu0 0.0
  %487 = vmatpush1.msra.mxu0 0.0
  %488 = vmatprep.subr.mxu0 0.0
  %489 = vmatpush1.msra.mxu0 0.0
  %490 = vmatprep.subr.mxu0 0.0
  %491 = vmatpush1.msra.mxu0 0.0
  %492 = vmatprep.subr.mxu0 0.0
  %493 = vmatpush1.msra.mxu0 0.0
  %494 = vmatprep.subr.mxu0 0.0
  %495 = vmatpush1.msra.mxu0 0.0
  %496 = vmatprep.subr.mxu0 0.0
  %497 = vmatpush1.msra.mxu0 0.0
  %498 = vmatprep.subr.mxu0 0.0
  %499 = vmatpush1.msra.mxu0 0.0
  %500 = vmatprep.subr.mxu0 0.0
  %501 = vmatpush1.msra.mxu0 0.0
  %502 = vmatprep.subr.mxu0 0.0
  %503 = vmatpush1.msra.mxu0 0.0
  %504 = vmatprep.subr.mxu0 0.0
  %505 = vmatpush1.msra.mxu0 0.0
  %506 = vmatprep.subr.mxu0 0.0
  %507 = vmatpush1.msra.mxu0 0.0
  %508 = vmatprep.subr.mxu0 0.0
  %509 = vmatpush1.msra.mxu0 0.0
  %510 = vmatprep.subr.mxu0 0.0
  %511 = vmatpush1.msra.mxu0 0.0
  %512 = vmatprep.subr.mxu0 0.0
  %513 = vmatpush1.msra.mxu0 0.0
  %514 = vmatprep.subr.mxu0 0.0
  %515 = vmatpush1.msra.mxu0 0.0
  %516 = vmatprep.subr.mxu0 0.0
  %517 = vmatpush1.msra.mxu0 0.0
  %518 = vmatprep.subr.mxu0 0.0
  %519 = vmatpush1.msra.mxu0 0.0
  %520 = vmatprep.subr.mxu0 0.0
  %521 = vmatpush1.msra.mxu0 0.0
  %522 = vmatprep.subr.mxu0 0.0
  %523 = vmatpush1.msra.mxu0 0.0
  %524 = vmatprep.subr.mxu0 0.0
  %525 = vmatpush1.msra.mxu0 0.0
  %526 = vmatprep.subr.mxu0 0.0
  %527 = vmatpush1.msra.mxu0 0.0
  %528 = vmatprep.mubr.f32.mxu0 0.0
  %529 = vmatmul.mubr.f32.gmra.mrb[0].mxu0 %v379
  %v530 = vpop.f32.mrb[0].mxu0
  %v531 = vadd.f32 0.0, %v530
  %v532 = vpop.f32.mrb[0].mxu0
  %v533 = vadd.f32 0.0, %v532
  %534 = vdwg.mxu0
  %v535 = vsel %vm359, %v460, 0.0
  %v536 = vsel %vm359, %v462, 0.0
  %v537 = vadd.f32 %v535, %v536
  %v538 = vsel %vm359, %v531, 0.0
  %v539 = vadd.f32 %v537, %v538
  %v540 = vsel %vm359, %v533, 0.0
  %v541 = vadd.f32 %v539, %v540
  %542 = vadd.xlane.f32.xlu0 %v541
  %v543 = vpop.xlane.xlu0 %542
  %v544 = vmul.f32 %v543, 0.001953125
  %v545 = vmul.f32 %v460, %v460
  %v546 = vmul.f32 %v462, %v462
  %v547 = vmul.f32 %v531, %v531
  %v548 = vmul.f32 %v533, %v533
  %v549 = vsel %vm359, %v545, 0.0
  %v550 = vsel %vm359, %v546, 0.0
  %v551 = vadd.f32 %v549, %v550
  %v552 = vsel %vm359, %v547, 0.0
  %v553 = vadd.f32 %v551, %v552
  %v554 = vsel %vm359, %v548, 0.0
  %v555 = vadd.f32 %v553, %v554
  %556 = vadd.xlane.f32.xlu0 %v555
  %v557 = vpop.xlane.xlu0 %556
  %v558 = vmul.f32 %v557, 0.001953125
  %v559 = vmul.f32 %v544, %v544
  %v560 = vsub.f32 %v558, %v559
  %v561 = vmax.f32 %v560, 0.0
  %v562 = vadd.f32 %v561, 1e-05
  %v563 = vrsqrt.pop %v562
  %v564 = vld [vmem:[%s4] sm:$0xf]
  %v565 = vmul.f32 %v563, %v564
  %v566 = vld [vmem:[%s5] sm:$0xf]
  %v567 = vmul.f32 %v544, %v565
  %v568 = vsub.f32 %v566, %v567
  %570 = vset.pattern.permute.xlu0 0
  %571 = vperm.xlu0 %570, %v565
  %v572 = vpop.permute.xlu0 %571
  %v574 = vmul.f32 %v460, %v572
  %v575 = vmul.f32 %v462, %v572
  %v576 = vmul.f32 %v531, %v572
  %v577 = vmul.f32 %v533, %v572
  %579 = vset.pattern.permute.xlu0 0
  %580 = vperm.xlu0 %579, %v568
  %v581 = vpop.permute.xlu0 %580
  %v583 = vadd.f32 %v574, %v581
  %v584 = vadd.f32 %v575, %v581
  %v585 = vadd.f32 %v576, %v581
  %v586 = vadd.f32 %v577, %v581
  %v587 = vmax.f32 %v583, 0.0
  %v588 = vmax.f32 %v584, 0.0
  %v589 = vmax.f32 %v585, 0.0
  %v590 = vmax.f32 %v586, 0.0
  %591 = vrot.lane.b32.xlu0 %v587, 17
  %v592 = vpop.permute.xlu0 %591
  %593 = vrot.lane.b32.xlu0 %v588, 17
  %v594 = vpop.permute.xlu0 %593
  %595 = vrot.lane.b32.xlu0 %v589, 17
  %v596 = vpop.permute.xlu0 %595
  %597 = vrot.lane.b32.xlu0 %v590, 17
  %v598 = vpop.permute.xlu0 %597
  %v599 = vsel %vm55, %v596, %v598
  %v600 = vsel %vm55, %v594, %v596
  %v601 = vsel %vm55, %v592, %v594
  %v602 = vsel %vm55, %v598, %v592
  %v603 = vmul.f32 %v602, %v63
  %v604 = vmul.f32 %v601, %v67
  %v605 = vmul.f32 %v600, %v71
  %v606 = vmul.f32 %v599, %v75
  %607 = vrot.lane.b32.xlu0 %v587, 16
  %v608 = vpop.permute.xlu0 %607
  %609 = vrot.lane.b32.xlu0 %v588, 16
  %v610 = vpop.permute.xlu0 %609
  %611 = vrot.lane.b32.xlu0 %v589, 16
  %v612 = vpop.permute.xlu0 %611
  %613 = vrot.lane.b32.xlu0 %v590, 16
  %v614 = vpop.permute.xlu0 %613
  %v615 = vsel %vm88, %v612, %v614
  %v616 = vsel %vm88, %v610, %v612
  %v617 = vsel %vm88, %v608, %v610
  %v618 = vsel %vm88, %v614, %v608
  %v619 = vmul.f32 %v618, %v96
  %v620 = vmul.f32 %v617, %v100
  %v621 = vmul.f32 %v616, %v104
  %v622 = vmul.f32 %v615, %v108
  %623 = vrot.lane.b32.xlu0 %v587, 15
  %v624 = vpop.permute.xlu0 %623
  %625 = vrot.lane.b32.xlu0 %v588, 15
  %v626 = vpop.permute.xlu0 %625
  %627 = vrot.lane.b32.xlu0 %v589, 15
  %v628 = vpop.permute.xlu0 %627
  %629 = vrot.lane.b32.xlu0 %v590, 15
  %v630 = vpop.permute.xlu0 %629
  %v631 = vsel %vm121, %v628, %v630
  %v632 = vsel %vm121, %v626, %v628
  %v633 = vsel %vm121, %v624, %v626
  %v634 = vsel %vm121, %v630, %v624
  %v635 = vmul.f32 %v634, %v129
  %v636 = vmul.f32 %v633, %v133
  %v637 = vmul.f32 %v632, %v137
  %v638 = vmul.f32 %v631, %v141
  %639 = vrot.lane.b32.xlu0 %v587, 1
  %v640 = vpop.permute.xlu0 %639
  %641 = vrot.lane.b32.xlu0 %v588, 1
  %v642 = vpop.permute.xlu0 %641
  %643 = vrot.lane.b32.xlu0 %v589, 1
  %v644 = vpop.permute.xlu0 %643
  %645 = vrot.lane.b32.xlu0 %v590, 1
  %v646 = vpop.permute.xlu0 %645
  %v647 = vsel %vm154, %v644, %v646
  %v648 = vsel %vm154, %v642, %v644
  %v649 = vsel %vm154, %v640, %v642
  %v650 = vsel %vm154, %v646, %v640
  %v651 = vmul.f32 %v650, %v162
  %v652 = vmul.f32 %v649, %v166
  %v653 = vmul.f32 %v648, %v170
  %v654 = vmul.f32 %v647, %v174
  %655 = vrot.lane.b32.xlu0 %v587, 127
  %v656 = vpop.permute.xlu0 %655
  %657 = vrot.lane.b32.xlu0 %v588, 127
  %v658 = vpop.permute.xlu0 %657
  %659 = vrot.lane.b32.xlu0 %v589, 127
  %v660 = vpop.permute.xlu0 %659
  %661 = vrot.lane.b32.xlu0 %v590, 127
  %v662 = vpop.permute.xlu0 %661
  %v663 = vsel %vm187, %v660, %v662
  %v664 = vsel %vm187, %v658, %v660
  %v665 = vsel %vm187, %v656, %v658
  %v666 = vsel %vm187, %v662, %v656
  %v667 = vmul.f32 %v665, %v195
  %v668 = vmul.f32 %v664, %v199
  %v669 = vmul.f32 %v663, %v203
  %v670 = vmul.f32 %v666, %v207
  %671 = vrot.lane.b32.xlu0 %v587, 113
  %v672 = vpop.permute.xlu0 %671
  %673 = vrot.lane.b32.xlu0 %v588, 113
  %v674 = vpop.permute.xlu0 %673
  %675 = vrot.lane.b32.xlu0 %v589, 113
  %v676 = vpop.permute.xlu0 %675
  %677 = vrot.lane.b32.xlu0 %v590, 113
  %v678 = vpop.permute.xlu0 %677
  %v679 = vsel %vm220, %v676, %v678
  %v680 = vsel %vm220, %v674, %v676
  %v681 = vsel %vm220, %v672, %v674
  %v682 = vsel %vm220, %v678, %v672
  %v683 = vmul.f32 %v681, %v228
  %v684 = vmul.f32 %v680, %v232
  %v685 = vmul.f32 %v679, %v236
  %v686 = vmul.f32 %v682, %v240
  %687 = vrot.lane.b32.xlu0 %v587, 112
  %v688 = vpop.permute.xlu0 %687
  %689 = vrot.lane.b32.xlu0 %v588, 112
  %v690 = vpop.permute.xlu0 %689
  %691 = vrot.lane.b32.xlu0 %v589, 112
  %v692 = vpop.permute.xlu0 %691
  %693 = vrot.lane.b32.xlu0 %v590, 112
  %v694 = vpop.permute.xlu0 %693
  %v695 = vsel %vm253, %v692, %v694
  %v696 = vsel %vm253, %v690, %v692
  %v697 = vsel %vm253, %v688, %v690
  %v698 = vsel %vm253, %v694, %v688
  %v699 = vmul.f32 %v697, %v261
  %v700 = vmul.f32 %v696, %v265
  %v701 = vmul.f32 %v695, %v269
  %v702 = vmul.f32 %v698, %v273
  %703 = vrot.lane.b32.xlu0 %v587, 111
  %v704 = vpop.permute.xlu0 %703
  %705 = vrot.lane.b32.xlu0 %v588, 111
  %v706 = vpop.permute.xlu0 %705
  %707 = vrot.lane.b32.xlu0 %v589, 111
  %v708 = vpop.permute.xlu0 %707
  %709 = vrot.lane.b32.xlu0 %v590, 111
  %v710 = vpop.permute.xlu0 %709
  %v711 = vsel %vm286, %v708, %v710
  %v712 = vsel %vm286, %v706, %v708
  %v713 = vsel %vm286, %v704, %v706
  %v714 = vsel %vm286, %v710, %v704
  %v715 = vmul.f32 %v713, %v294
  %v716 = vmul.f32 %v712, %v298
  %v717 = vmul.f32 %v711, %v302
  %v718 = vmul.f32 %v714, %v306
  %v723 = vrot.slane %v619, 4
  %v724 = vrot.slane %v620, 4
  %v725 = vrot.slane %v621, 4
  %v726 = vrot.slane %v622, 4
  %v735 = vrot.slane %v651, 4
  %v736 = vrot.slane %v652, 4
  %v737 = vrot.slane %v653, 4
  %v738 = vrot.slane %v654, 4
  %v747 = vrot.slane %v667, 4
  %v748 = vrot.slane %v668, 4
  %v749 = vrot.slane %v669, 4
  %v750 = vrot.slane %v670, 4
  %v759 = vrot.slane %v699, 4
  %v760 = vrot.slane %v700, 4
  %v761 = vrot.slane %v701, 4
  %v762 = vrot.slane %v702, 4
  %v767 = vsel %vm359, %v603, %v723
  %v768 = vsel %vm359, %v604, %v724
  %v769 = vsel %vm359, %v605, %v725
  %v770 = vsel %vm359, %v606, %v726
  %v771 = vsel %vm359, %v635, %v735
  %v772 = vsel %vm359, %v636, %v736
  %v773 = vsel %vm359, %v637, %v737
  %v774 = vsel %vm359, %v638, %v738
  %v775 = vsel %vm359, %v587, %v747
  %v776 = vsel %vm359, %v588, %v748
  %v777 = vsel %vm359, %v589, %v749
  %v778 = vsel %vm359, %v590, %v750
  %v779 = vsel %vm359, %v683, %v759
  %v780 = vsel %vm359, %v684, %v760
  %v781 = vsel %vm359, %v685, %v761
  %v782 = vsel %vm359, %v686, %v762
  %v783 = vld [vmem:[%s3] sm:$0xf]
  %v785 = vsel %vm377, %v783, 0
  %v788 = vsel %vm359, %v715, 0
  %v791 = vsel %vm359, %v716, 0
  %v794 = vsel %vm359, %v717, 0
  %v797 = vsel %vm359, %v718, 0
  %799 = vmatprep.subr.mxu0 %v768
  %800 = vmatpush1.msra.mxu0 %v767
  %801 = vmatprep.subr.mxu0 %v772
  %802 = vmatpush1.msra.mxu0 %v771
  %803 = vmatprep.subr.mxu0 %v776
  %804 = vmatpush1.msra.mxu0 %v775
  %805 = vmatprep.subr.mxu0 %v780
  %806 = vmatpush1.msra.mxu0 %v779
  %807 = vmatprep.subr.mxu0 %v791
  %808 = vmatpush1.msra.mxu0 %v788
  %809 = vmatprep.subr.mxu0 0.0
  %810 = vmatpush1.msra.mxu0 0.0
  %811 = vmatprep.subr.mxu0 0.0
  %812 = vmatpush1.msra.mxu0 0.0
  %813 = vmatprep.subr.mxu0 0.0
  %814 = vmatpush1.msra.mxu0 0.0
  %815 = vmatprep.subr.mxu0 0.0
  %816 = vmatpush1.msra.mxu0 0.0
  %817 = vmatprep.subr.mxu0 0.0
  %818 = vmatpush1.msra.mxu0 0.0
  %819 = vmatprep.subr.mxu0 0.0
  %820 = vmatpush1.msra.mxu0 0.0
  %821 = vmatprep.subr.mxu0 0.0
  %822 = vmatpush1.msra.mxu0 0.0
  %823 = vmatprep.subr.mxu0 0.0
  %824 = vmatpush1.msra.mxu0 0.0
  %825 = vmatprep.subr.mxu0 0.0
  %826 = vmatpush1.msra.mxu0 0.0
  %827 = vmatprep.subr.mxu0 0.0
  %828 = vmatpush1.msra.mxu0 0.0
  %829 = vmatprep.subr.mxu0 0.0
  %830 = vmatpush1.msra.mxu0 0.0
  %831 = vmatprep.subr.mxu0 0.0
  %832 = vmatpush1.msra.mxu0 0.0
  %833 = vmatprep.subr.mxu0 0.0
  %834 = vmatpush1.msra.mxu0 0.0
  %835 = vmatprep.subr.mxu0 0.0
  %836 = vmatpush1.msra.mxu0 0.0
  %837 = vmatprep.subr.mxu0 0.0
  %838 = vmatpush1.msra.mxu0 0.0
  %839 = vmatprep.subr.mxu0 0.0
  %840 = vmatpush1.msra.mxu0 0.0
  %841 = vmatprep.subr.mxu0 0.0
  %842 = vmatpush1.msra.mxu0 0.0
  %843 = vmatprep.subr.mxu0 0.0
  %844 = vmatpush1.msra.mxu0 0.0
  %845 = vmatprep.subr.mxu0 0.0
  %846 = vmatpush1.msra.mxu0 0.0
  %847 = vmatprep.subr.mxu0 0.0
  %848 = vmatpush1.msra.mxu0 0.0
  %849 = vmatprep.subr.mxu0 0.0
  %850 = vmatpush1.msra.mxu0 0.0
  %851 = vmatprep.subr.mxu0 0.0
  %852 = vmatpush1.msra.mxu0 0.0
  %853 = vmatprep.subr.mxu0 0.0
  %854 = vmatpush1.msra.mxu0 0.0
  %855 = vmatprep.subr.mxu0 0.0
  %856 = vmatpush1.msra.mxu0 0.0
  %857 = vmatprep.subr.mxu0 0.0
  %858 = vmatpush1.msra.mxu0 0.0
  %859 = vmatprep.subr.mxu0 0.0
  %860 = vmatpush1.msra.mxu0 0.0
  %861 = vmatprep.subr.mxu0 0.0
  %862 = vmatpush1.msra.mxu0 0.0
  %863 = vmatprep.mubr.f32.mxu0 0.0
  %864 = vmatmul.mubr.f32.gmra.mrb[0].mxu0 %v785
  %v865 = vpop.f32.mrb[0].mxu0
  %v866 = vadd.f32 0.0, %v865
  %v867 = vpop.f32.mrb[0].mxu0
  %v868 = vadd.f32 0.0, %v867
  %869 = vdwg.mxu0
  %870 = vmatprep.subr.mxu0 %v770
  %871 = vmatpush1.msra.mxu0 %v769
  %872 = vmatprep.subr.mxu0 %v774
  %873 = vmatpush1.msra.mxu0 %v773
  %874 = vmatprep.subr.mxu0 %v778
  %875 = vmatpush1.msra.mxu0 %v777
  %876 = vmatprep.subr.mxu0 %v782
  %877 = vmatpush1.msra.mxu0 %v781
  %878 = vmatprep.subr.mxu0 %v797
  %879 = vmatpush1.msra.mxu0 %v794
  %880 = vmatprep.subr.mxu0 0.0
  %881 = vmatpush1.msra.mxu0 0.0
  %882 = vmatprep.subr.mxu0 0.0
  %883 = vmatpush1.msra.mxu0 0.0
  %884 = vmatprep.subr.mxu0 0.0
  %885 = vmatpush1.msra.mxu0 0.0
  %886 = vmatprep.subr.mxu0 0.0
  %887 = vmatpush1.msra.mxu0 0.0
  %888 = vmatprep.subr.mxu0 0.0
  %889 = vmatpush1.msra.mxu0 0.0
  %890 = vmatprep.subr.mxu0 0.0
  %891 = vmatpush1.msra.mxu0 0.0
  %892 = vmatprep.subr.mxu0 0.0
  %893 = vmatpush1.msra.mxu0 0.0
  %894 = vmatprep.subr.mxu0 0.0
  %895 = vmatpush1.msra.mxu0 0.0
  %896 = vmatprep.subr.mxu0 0.0
  %897 = vmatpush1.msra.mxu0 0.0
  %898 = vmatprep.subr.mxu0 0.0
  %899 = vmatpush1.msra.mxu0 0.0
  %900 = vmatprep.subr.mxu0 0.0
  %901 = vmatpush1.msra.mxu0 0.0
  %902 = vmatprep.subr.mxu0 0.0
  %903 = vmatpush1.msra.mxu0 0.0
  %904 = vmatprep.subr.mxu0 0.0
  %905 = vmatpush1.msra.mxu0 0.0
  %906 = vmatprep.subr.mxu0 0.0
  %907 = vmatpush1.msra.mxu0 0.0
  %908 = vmatprep.subr.mxu0 0.0
  %909 = vmatpush1.msra.mxu0 0.0
  %910 = vmatprep.subr.mxu0 0.0
  %911 = vmatpush1.msra.mxu0 0.0
  %912 = vmatprep.subr.mxu0 0.0
  %913 = vmatpush1.msra.mxu0 0.0
  %914 = vmatprep.subr.mxu0 0.0
  %915 = vmatpush1.msra.mxu0 0.0
  %916 = vmatprep.subr.mxu0 0.0
  %917 = vmatpush1.msra.mxu0 0.0
  %918 = vmatprep.subr.mxu0 0.0
  %919 = vmatpush1.msra.mxu0 0.0
  %920 = vmatprep.subr.mxu0 0.0
  %921 = vmatpush1.msra.mxu0 0.0
  %922 = vmatprep.subr.mxu0 0.0
  %923 = vmatpush1.msra.mxu0 0.0
  %924 = vmatprep.subr.mxu0 0.0
  %925 = vmatpush1.msra.mxu0 0.0
  %926 = vmatprep.subr.mxu0 0.0
  %927 = vmatpush1.msra.mxu0 0.0
  %928 = vmatprep.subr.mxu0 0.0
  %929 = vmatpush1.msra.mxu0 0.0
  %930 = vmatprep.subr.mxu0 0.0
  %931 = vmatpush1.msra.mxu0 0.0
  %932 = vmatprep.subr.mxu0 0.0
  %933 = vmatpush1.msra.mxu0 0.0
  %934 = vmatprep.mubr.f32.mxu0 0.0
  %935 = vmatmul.mubr.f32.gmra.mrb[0].mxu0 %v785
  %v936 = vpop.f32.mrb[0].mxu0
  %v937 = vadd.f32 0.0, %v936
  %v938 = vpop.f32.mrb[0].mxu0
  %v939 = vadd.f32 0.0, %v938
  %940 = vdwg.mxu0
  %v941 = vsel %vm359, %v866, 0.0
  %v942 = vsel %vm359, %v868, 0.0
  %v943 = vadd.f32 %v941, %v942
  %v944 = vsel %vm359, %v937, 0.0
  %v945 = vadd.f32 %v943, %v944
  %v946 = vsel %vm359, %v939, 0.0
  %v947 = vadd.f32 %v945, %v946
  %948 = vadd.xlane.f32.xlu0 %v947
  %v949 = vpop.xlane.xlu0 %948
  %v950 = vmul.f32 %v949, 0.001953125
  %v951 = vmul.f32 %v866, %v866
  %v952 = vmul.f32 %v868, %v868
  %v953 = vmul.f32 %v937, %v937
  %v954 = vmul.f32 %v939, %v939
  %v955 = vsel %vm359, %v951, 0.0
  %v956 = vsel %vm359, %v952, 0.0
  %v957 = vadd.f32 %v955, %v956
  %v958 = vsel %vm359, %v953, 0.0
  %v959 = vadd.f32 %v957, %v958
  %v960 = vsel %vm359, %v954, 0.0
  %v961 = vadd.f32 %v959, %v960
  %962 = vadd.xlane.f32.xlu0 %v961
  %v963 = vpop.xlane.xlu0 %962
  %v964 = vmul.f32 %v963, 0.001953125
  %v965 = vmul.f32 %v950, %v950
  %v966 = vsub.f32 %v964, %v965
  %v967 = vmax.f32 %v966, 0.0
  %v968 = vadd.f32 %v967, 1e-05
  %v969 = vrsqrt.pop %v968
  %v970 = vld [vmem:[%s6] sm:$0xf]
  %v971 = vmul.f32 %v969, %v970
  %v972 = vld [vmem:[%s7] sm:$0xf]
  %v973 = vmul.f32 %v950, %v971
  %v974 = vsub.f32 %v972, %v973
  %976 = vset.pattern.permute.xlu0 0
  %977 = vperm.xlu0 %976, %v971
  %v978 = vpop.permute.xlu0 %977
  %v980 = vmul.f32 %v866, %v978
  %v981 = vmul.f32 %v868, %v978
  %v982 = vmul.f32 %v937, %v978
  %v983 = vmul.f32 %v939, %v978
  %985 = vset.pattern.permute.xlu0 0
  %986 = vperm.xlu0 %985, %v974
  %v987 = vpop.permute.xlu0 %986
  %v989 = vadd.f32 %v980, %v987
  %v990 = vadd.f32 %v981, %v987
  %v991 = vadd.f32 %v982, %v987
  %v992 = vadd.f32 %v983, %v987
  %v993 = vadd.f32 %v989, %v37
  %v994 = vadd.f32 %v990, %v41
  %v995 = vadd.f32 %v991, %v38
  %v996 = vadd.f32 %v992, %v42
  %v997 = vmax.f32 %v993, 0.0
  %v998 = vmax.f32 %v994, 0.0
  %v999 = vmax.f32 %v995, 0.0
  %v1000 = vmax.f32 %v996, 0.0
  %v1005 = vcombine.low %v997, %v998
  %v1006 = vcombine.low %v999, %v1000
  %1009 = vst [vmem:[%s8] sm:$0xff] %v1005
  %1010 = vst [vmem:[%s8 + $0x8] sm:$0xff] %v1006
  // Predicated region
  $region34: #{basic_block_forward.1} parent=0 // pred_check
    _
  $region35: #{basic_block_forward.1} parent=0 // pred_check_branch
    %1012 = sbr.rel (0) target = $region37
  $region36: #{basic_block_forward.1} parent=0 // pred_region
    _
  $region37: #{basic_block_forward.1} parent=0 // pred_fallthru
    _
  // Predicated region
  $region38: #{basic_block_forward.1} parent=0 // pred_check
    _
  $region39: #{basic_block_forward.1} parent=0 // pred_check_branch
    %1014 = sbr.rel (0) target = $region41
  $region40: #{basic_block_forward.1} parent=0 // pred_region
    _
  $region41: #{basic_block_forward.1} parent=0 // pred_fallthru
    _

</llo_original>
